<compile_context>
chip_gen: v6e
topology: v6e:2x2x1
jax: 0.10.0
libtpu: 0.0.40
codegen_flags: <defaults>
</compile_context>

<pallas_src>
import functools

import jax
import jax.numpy as jnp
from jax.experimental import pallas as pl
from jax.experimental.pallas import tpu as pltpu


# ---------------------------------------------------------------------------
# Pallas kernel: y = x * scale + shift, scale/shift broadcast along lanes.
#   x_ref / o_ref : (TM, TN)      -- TM rows = (batch, channel) pairs, TN = spatial
#   scale_ref     : (BC_pad, 1)   -- gamma + 1 (f32), whole array resident in VMEM
#   shift_ref     : (BC_pad, 1)   -- beta      (f32), whole array resident in VMEM
# ---------------------------------------------------------------------------
def film_apply_kernel(x_ref, scale_ref, shift_ref, o_ref, *, tm: int):
    i = pl.program_id(0)
    r0 = i * tm
    if tm % 8 == 0:  # static; hint aligned row slices (when tm == BC the row grid is 1)
        r0 = pl.multiple_of(r0, 8)
    scale = scale_ref[pl.ds(r0, tm), :]  # (tm, 1) f32
    shift = shift_ref[pl.ds(r0, tm), :]  # (tm, 1) f32
    # Single fused multiply-add per element; cast back so bf16 x/out also works.
    o_ref[...] = (x_ref[...] * scale + shift).astype(o_ref.dtype)


def _choose_tiles(BC: int, S: int, itemsize: int):
    """Pick (TM, TN) block dims for the (BC, S) streaming view.

    - TM: full BC when BC <= 64 (legal full-dim block, bounded), else a fixed 64
      (multiple of 8; ragged row tail handled by cdiv + block masking).
    - TN: large multiple of 128 (lane-dense, unmasked vst) or the full S.
    - x block capped at ~4 MiB, so double-buffered in+out stays ~16 MiB VMEM:
      inside the explicit 32 MiB vmem_limit_bytes on every generation (v7x physical
      VMEM is 64 MiB) while amortizing the ~0.35 us per-grid-step overhead.
    """
    MAX_BLOCK_BYTES = 4 * 1024 * 1024
    max_elems = MAX_BLOCK_BYTES // itemsize

    TM = BC if BC <= 64 else 64

    lane_budget = max(128, max_elems // max(TM, 1))
    if S <= lane_budget:
        TN = S
    else:
        TN = (lane_budget // 128) * 128
    return TM, TN


def init_film_params(key, embedding_dim, output_dim, dtype=jnp.float32,
                     zero_init_last=False):
    """Weight layout is (in, out), i.e. pre-transposed vs. torch.nn.Linear.

    The PyTorch module zero-inits the last Linear (zero_init_last=True reproduces that,
    making the layer an identity at init).  The default here uses small nonzero values
    so the numeric path is actually exercised.
    """
    k1, k2, k3, k4 = jax.random.split(key, 4)
    w1 = jax.random.normal(k1, (embedding_dim, embedding_dim), dtype) * 0.05
    b1 = jax.random.normal(k2, (1, embedding_dim), dtype) * 0.05
    if zero_init_last:
        w2 = jnp.zeros((embedding_dim, 2 * output_dim), dtype)
        b2 = jnp.zeros((1, 2 * output_dim), dtype)
    else:
        w2 = jax.random.normal(k3, (embedding_dim, 2 * output_dim), dtype) * 0.05
        b2 = jax.random.normal(k4, (1, 2 * output_dim), dtype) * 0.05
    return dict(w1=w1, b1=b1, w2=w2, b2=b2)


@jax.jit
def film_layer_forward(x, cond, params):
    """x: (B, C, T, H, W), cond: (B, E).  Output dtype == x dtype."""
    B, C, T, H, W = x.shape
    S = T * H * W
    BC = B * C

    # ---------- FiLM MLP in plain XLA (far too small for an MXU pass) ----------
    h = jnp.dot(cond.astype(jnp.float32), params["w1"].astype(jnp.float32),
                preferred_element_type=jnp.float32) + params["b1"].astype(jnp.float32)
    h = h * jax.nn.sigmoid(h)  # SiLU
    film = jnp.dot(h, params["w2"].astype(jnp.float32),
                   preferred_element_type=jnp.float32) + params["b2"].astype(jnp.float32)
    scale = (film[:, :C] + 1.0).reshape(BC, 1).astype(jnp.float32)  # gamma + 1
    shift = film[:, C:].reshape(BC, 1).astype(jnp.float32)          # beta

    # ---------- streaming FiLM modulation (HBM-bound Pallas kernel) ----------
    # Lane-dense 2D view: row = (b, c) pair -> full vregs, unmasked lane-dense stores.
    x2d = x.reshape(BC, S)
    itemsize = jnp.dtype(x.dtype).itemsize
    TM, TN = _choose_tiles(BC, S, itemsize)
    grid = (pl.cdiv(BC, TM), pl.cdiv(S, TN))  # cdiv + block masking: no dropped tail

    # Pad scale/shift rows up to grid[0]*TM identity rows so the in-kernel pl.ds row
    # slice of the whole-array-resident refs never reads out of bounds.
    BC_pad = grid[0] * TM
    if BC_pad != BC:
        pad = BC_pad - BC
        scale = jnp.concatenate([scale, jnp.ones((pad, 1), jnp.float32)], axis=0)
        shift = jnp.concatenate([shift, jnp.zeros((pad, 1), jnp.float32)], axis=0)

    cost = pl.CostEstimate(
        flops=2 * BC * S,
        transcendentals=0,
        bytes_accessed=2 * BC * S * itemsize + 2 * BC_pad * 4,
    )

    out2d = pl.pallas_call(
        functools.partial(film_apply_kernel, tm=TM),
        out_shape=jax.ShapeDtypeStruct((BC, S), x.dtype),
        grid_spec=pltpu.PrefetchScalarGridSpec(
            num_scalar_prefetch=0,
            grid=grid,
            in_specs=[
                pl.BlockSpec((TM, TN), lambda i, j: (i, j)),
                # Constant block index => DMA'd once, resident across all grid steps.
                pl.BlockSpec((BC_pad, 1), lambda i, j: (0, 0)),
                pl.BlockSpec((BC_pad, 1), lambda i, j: (0, 0)),
            ],
            out_specs=pl.BlockSpec((TM, TN), lambda i, j: (i, j)),
        ),
        compiler_params=pltpu.CompilerParams(
            dimension_semantics=("parallel", "parallel"),
            vmem_limit_bytes=32 * 1024 * 1024,
        ),
        cost_estimate=cost,
        # In-place modulation when x is a donatable intermediate; copy-inserted otherwise.
        input_output_aliases={0: 0},
    )(x2d, scale, shift)

    return out2d.reshape(B, C, T, H, W)


def film_layer_reference(x, cond, params):
    C = x.shape[1]
    h = cond @ params["w1"] + params["b1"]
    h = h * jax.nn.sigmoid(h)
    film = h @ params["w2"] + params["b2"]
    gamma = film[:, :C].reshape(-1, C, 1, 1, 1)
    beta = film[:, C:].reshape(-1, C, 1, 1, 1)
    return x * (gamma + 1.0) + beta


if __name__ == "__main__":
    B, C, T, H, W = 2, 4, 2, 8, 8   # output_dim = C = 4, spatial S = 128
    E = 32                          # embedding_dim

    key = jax.random.PRNGKey(0)
    kx, kc, kp, kx2 = jax.random.split(key, 4)
    x = jax.random.normal(kx, (B, C, T, H, W), jnp.float32)
    cond = jax.random.normal(kc, (B, E), jnp.float32)

    # 1) nonzero second Linear: exercise the full numeric path (f32).
    params = init_film_params(kp, E, C)
    out = jax.block_until_ready(film_layer_forward(x, cond, params))
    ref = film_layer_reference(x, cond, params)
    assert out.shape == (B, C, T, H, W) and out.dtype == x.dtype
    assert jnp.allclose(out, ref, atol=1e-5, rtol=1e-5), "f32 mismatch vs reference"

    # 2) PyTorch-default zero-init of the last Linear: layer must be identity.
    params0 = init_film_params(kp, E, C, zero_init_last=True)
    out0 = jax.block_until_ready(film_layer_forward(x, cond, params0))
    assert jnp.allclose(out0, x, atol=1e-6, rtol=1e-6), "zero-init should be identity"

    # 3) bf16 activations (HBM-bound ~2x path); scale/shift stay f32 inside the kernel.
    x_bf16 = x.astype(jnp.bfloat16)
    out_bf = jax.block_until_ready(film_layer_forward(x_bf16, cond, params))
    ref_bf = film_layer_reference(x_bf16.astype(jnp.float32), cond, params)
    assert out_bf.dtype == jnp.bfloat16
    assert jnp.allclose(out_bf.astype(jnp.float32), ref_bf, atol=5e-2, rtol=5e-2), \
        "bf16 mismatch vs reference"

    # 4) ragged row count (BC = 72 > TM cap of 64): exercises the capped-TM, padded
    #    scale/shift rows, and masked row-tail path with a 2-row-block grid.
    B2, C2 = 2, 36
    x2 = jax.random.normal(kx2, (B2, C2, T, H, W), jnp.float32)
    params2 = init_film_params(kp, E, C2)
    out2 = jax.block_until_ready(film_layer_forward(x2, cond, params2))
    ref2 = film_layer_reference(x2, cond, params2)
    assert jnp.allclose(out2, ref2, atol=1e-5, rtol=1e-5), "ragged-BC mismatch vs reference"

    print("KERNEL_OK")
</pallas_src>

<mosaic_0001>
module attributes {stable_mosaic.version = 11 : i64} {
  func.func @film_apply_kernel(%arg0: i32, %arg1: i32, %arg2: memref<8x128xf32, #tpu.memory_space<vmem>>, %arg3: memref<8x1xf32, #tpu.memory_space<vmem>>, %arg4: memref<8x1xf32, #tpu.memory_space<vmem>>, %arg5: memref<8x128xf32, #tpu.memory_space<vmem>>) attributes {dimension_semantics = [#tpu.dimension_semantics<parallel>, #tpu.dimension_semantics<parallel>], iteration_bounds = array<i64: 1, 1>, scalar_prefetch = 0 : i64, scratch_operands = 0 : i64, tpu.core_type = #tpu.core_type<tc>, window_params = [{transform_indices = @transform_0, window_bounds = array<i64: 8, 128>}, {pipeline_mode = #tpu.pipeline_mode<synchronous>, transform_indices = @transform_1, window_bounds = array<i64: 8, 1>}, {pipeline_mode = #tpu.pipeline_mode<synchronous>, transform_indices = @transform_2, window_bounds = array<i64: 8, 1>}, {transform_indices = @transform_3, window_bounds = array<i64: 8, 128>}]} {
    %c8_i32 = arith.constant 8 : i32
    %0 = arith.muli %arg0, %c8_i32 : i32
    %1 = tpu.assume_multiple %0, 8 : i32
    %2 = arith.index_cast %1 : i32 to index
    %c0 = arith.constant 0 : index
    %3 = vector.load %arg3[%2, %c0] : memref<8x1xf32, #tpu.memory_space<vmem>>, vector<8x1xf32>
    %4 = arith.index_cast %1 : i32 to index
    %c0_0 = arith.constant 0 : index
    %5 = vector.load %arg4[%4, %c0_0] : memref<8x1xf32, #tpu.memory_space<vmem>>, vector<8x1xf32>
    %c0_1 = arith.constant 0 : index
    %c0_2 = arith.constant 0 : index
    %6 = vector.load %arg2[%c0_1, %c0_2] : memref<8x128xf32, #tpu.memory_space<vmem>>, vector<8x128xf32>
    %7 = vector.broadcast %3 : vector<8x1xf32> to vector<8x128xf32>
    %8 = arith.mulf %6, %7 : vector<8x128xf32>
    %9 = vector.broadcast %5 : vector<8x1xf32> to vector<8x128xf32>
    %10 = arith.addf %8, %9 : vector<8x128xf32>
    %c0_3 = arith.constant 0 : index
    %c0_4 = arith.constant 0 : index
    %11 = vector.load %arg5[%c0_3, %c0_4] : memref<8x128xf32, #tpu.memory_space<vmem>>, vector<8x128xf32>
    tpu.vector_store %arg5[%c0_3, %c0_4], %10 {strides = array<i32>} : memref<8x128xf32, #tpu.memory_space<vmem>>, vector<8x128xf32>,
    return
  }
  func.func @transform_0(%arg0: i32, %arg1: i32) -> (i32, i32) {
    %c0_i32 = arith.constant 0 : i32
    return %arg0, %arg1 : i32, i32
  }
  func.func @transform_1(%arg0: i32, %arg1: i32) -> (i32, i32) {
    %c0_i32 = arith.constant 0 : i32
    %c0_i32_0 = arith.constant 0 : i32
    %c0_i32_1 = arith.constant 0 : i32
    return %c0_i32, %c0_i32_0 : i32, i32
  }
  func.func @transform_2(%arg0: i32, %arg1: i32) -> (i32, i32) {
    %c0_i32 = arith.constant 0 : i32
    %c0_i32_0 = arith.constant 0 : i32
    %c0_i32_1 = arith.constant 0 : i32
    return %c0_i32, %c0_i32_0 : i32, i32
  }
  func.func @transform_3(%arg0: i32, %arg1: i32) -> (i32, i32) {
    %c0_i32 = arith.constant 0 : i32
    return %arg0, %arg1 : i32, i32
  }
}

</mosaic_0001>

<llo_original>
// kernel: film_layer_forward.1
$region0: #{film_layer_forward.1}
  #allocation0 [shape = 'u32[]', space=smem, size = 0x4, offset = 0x4, fixed_abs, tag = 'smem constant byte address 0x4 - core index']
  #allocation1 [shape = 'u32[144,128]{1,0:T(1,128)}', space=vmem, size = 0x12000, scoped, tag = 'internal scratch']
  %s0 = inlined_call_operand.vmem [shape: f32[8,128], index: 0, kind: input, shape index: {}, may-alias: {0,3}]
  %s1 = inlined_call_operand.vmem [shape: f32[8,1], index: 1, kind: input, shape index: {}]
  %s2 = inlined_call_operand.vmem [shape: f32[8,1], index: 2, kind: input, shape index: {}]
  %s3 = inlined_call_operand.vmem [shape: f32[8,128], index: 3, kind: output, shape index: {}, may-alias: {0,3}]
  %s4 = sld [smem:[#allocation0]]
  $region22: #{film_layer_forward.1} parent=0
    _
  %s6 = ssub.s32 1, %s4
  %s7 = scalar_select 0, %s6, %s4
  // Predicated region
  $region2: #{film_layer_forward.1} parent=0 // pred_check
    _
  $region3: #{film_layer_forward.1} parent=0 // pred_check_branch
    %9 = sbr.rel (0) target = $region5
  $region4: #{film_layer_forward.1} parent=0 // pred_region
    _
  $region5: #{film_layer_forward.1} parent=0 // pred_fallthru
    _
  // Predicated region
  $region6: #{film_layer_forward.1} parent=0 // pred_check
    _
  $region7: #{film_layer_forward.1} parent=0 // pred_check_branch
    %11 = sbr.rel (0) target = $region9
  $region8: #{film_layer_forward.1} parent=0 // pred_region
    _
  $region9: #{film_layer_forward.1} parent=0 // pred_fallthru
    _
  // Predicated region
  $region10: #{film_layer_forward.1} parent=0 // pred_check
    _
  $region11: #{film_layer_forward.1} parent=0 // pred_check_branch
    %13 = sbr.rel (0) target = $region13
  $region12: #{film_layer_forward.1} parent=0 // pred_region
    _
  $region13: #{film_layer_forward.1} parent=0 // pred_fallthru
    _
  %s14 = smul.u32 0, 8
  %s15 = scalar_lea.vmem %s1, %s14
  %v16 = vld [vmem:[%s15] sm:$0xff]
  %s17 = scalar_lea.vmem %s2, %s14
  %v18 = vld [vmem:[%s17] sm:$0xff]
  %v19 = vld [vmem:[%s0] sm:$0xff]
  %21 = vset.pattern.permute.xlu0 0
  %22 = vperm.xlu0 %21, %v16
  %v23 = vpop.permute.xlu0 %22
  %v25 = vmul.f32 %v19, %v23
  %27 = vset.pattern.permute.xlu0 0
  %28 = vperm.xlu0 %27, %v18
  %v29 = vpop.permute.xlu0 %28
  %v31 = vadd.f32 %v25, %v29
  %32 = vst [vmem:[%s3] sm:$0xff] %v31
  // Predicated region
  $region14: #{film_layer_forward.1} parent=0 // pred_check
    _
  $region15: #{film_layer_forward.1} parent=0 // pred_check_branch
    %34 = sbr.rel (0) target = $region17
  $region16: #{film_layer_forward.1} parent=0 // pred_region
    _
  $region17: #{film_layer_forward.1} parent=0 // pred_fallthru
    _
  // Predicated region
  $region18: #{film_layer_forward.1} parent=0 // pred_check
    _
  $region19: #{film_layer_forward.1} parent=0 // pred_check_branch
    %36 = sbr.rel (0) target = $region21
  $region20: #{film_layer_forward.1} parent=0 // pred_region
    _
  $region21: #{film_layer_forward.1} parent=0 // pred_fallthru
    _

</llo_original>
